<compile_context>
chip_gen: v7x
topology: tpu7x:2x2x1
jax: 0.10.0
libtpu: 0.0.40
codegen_flags: <defaults>
</compile_context>

<pallas_src>
import functools

import jax
import jax.numpy as jnp
from jax import lax
from jax.experimental import pallas as pl
from jax.experimental.pallas import tpu as pltpu


def _budget():
    """(block element budget, scoped vmem limit) sized per TPU generation."""
    try:
        cap = int(pltpu.get_tpu_info().vmem_capacity_bytes)
    except Exception:
        cap = 64 * 1024 * 1024  # conservative (v7x-sized) fallback
    if cap <= 64 * 1024 * 1024:
        # v7x-class: 64 MiB VMEM per TensorCore -> smaller blocks, modest limit.
        return 128 * 1024, 40 * 1024 * 1024
    # v5e / v6e: 128 MiB VMEM -> ~1 MiB input blocks amortize per-step overhead.
    return 256 * 1024, 80 * 1024 * 1024


def _localization_kernel(x_ref, out_ref, *, w):
    # x_ref   : (TB, TC, H*W)    input planes, flat spatial in the lane dim
    # out_ref : (TB, 2, TC, H*W) [:, 0] = step_i, [:, 1] = step_j
    hw = x_ref.shape[-1]
    x = x_ref[...].astype(jnp.float32)  # compute in f32 even for bf16 inputs

    # Row/column boundary masks from one lane iota, hoisted and broadcast once
    # (JAX does not CSE broadcast_in_dim, so don't re-broadcast per where).
    lane = lax.broadcasted_iota(jnp.int32, (1, 1, hw), 2)
    row0 = jnp.broadcast_to(lane < w, x.shape)          # row i == 0
    rowl = jnp.broadcast_to(lane >= hw - w, x.shape)    # row i == h-1
    col = lane % w                                      # AND when w is a power of 2
    col0 = jnp.broadcast_to(col == 0, x.shape)          # col j == 0
    coll = jnp.broadcast_to(col == w - 1, x.shape)      # col j == w-1

    # Vertical neighbours (zero-padded) -> di, dii; neighbours die right after.
    up = jnp.where(row0, 0.0, pltpu.roll(x, w, 2))       # x[i-1, j]
    dn = jnp.where(rowl, 0.0, pltpu.roll(x, hw - w, 2))  # x[i+1, j]
    di = 0.5 * (dn - up)                                  # [[0,-.5,0],[0,0,0],[0,.5,0]]
    dii = (up + dn) - 2.0 * x                             # [[0,1,0],[0,-2,0],[0,1,0]]
    del up, dn

    # Horizontal neighbours -> dj, djj.
    lf = jnp.where(col0, 0.0, pltpu.roll(x, 1, 2))        # x[i, j-1]
    rt = jnp.where(coll, 0.0, pltpu.roll(x, hw - 1, 2))   # x[i, j+1]
    dj = 0.5 * (rt - lf)                                   # [[0,0,0],[-.5,0,.5],[0,0,0]]
    djj = (lf + rt) - 2.0 * x                              # [[0,0,0],[1,-2,1],[0,0,0]]
    del lf, rt

    # Mixed derivative from the already column-masked dj:
    #   dij = 0.25*(x[i-1,j-1] - x[i-1,j+1] - x[i+1,j-1] + x[i+1,j+1])
    #       = 0.5*(dj[i+1, j] - dj[i-1, j])
    dj_dn = jnp.where(rowl, 0.0, pltpu.roll(dj, hw - w, 2))
    dj_up = jnp.where(row0, 0.0, pltpu.roll(dj, w, 2))
    dij = 0.5 * (dj_dn - dj_up)
    del dj_dn, dj_up

    # 2x2 Hessian inverse + Newton step, single exact reciprocal of det
    # (matches the torch reference, which divides the raw determinant).
    det = dii * djj - dij * dij
    inv_det = 1.0 / det
    out_ref[:, 0, :, :] = (-(djj * di - dij * dj) * inv_det).astype(out_ref.dtype)
    out_ref[:, 1, :, :] = (-(dii * dj - dij * di) * inv_det).astype(out_ref.dtype)


def handcrafted_localization(batch):
    """batch: (b, c, h, w). Returns (b, 2, c, h, w) = stack([step_i, step_j], 1)."""
    b, c, h, w = batch.shape
    hw = h * w
    dtype = batch.dtype
    x = batch.reshape(b, c, hw)  # free reshape (same memory order)

    block_elems, vmem_limit = _budget()
    sub = max(1, 32 // jnp.dtype(dtype).itemsize)  # sublane multiple: 8 f32, 16 bf16

    # Channel tile: whole channel axis when it fits the budget, otherwise a
    # sublane-friendly multiple (keeps the (8,128) block constraint satisfied).
    if c * hw <= block_elems:
        tc = c
    else:
        tc = min(c, max(sub, (block_elems // hw) // sub * sub))
    # TODO(synk): spatial (row) tiling with a 1-row halo for the few-channels x
    # huge-plane case where tc*hw alone exceeds the VMEM budget.

    # Batch tile fills the remaining budget.
    tb = max(1, min(b, block_elems // max(1, tc * hw)))

    # Guarantee >= 2 grid steps along a "parallel" axis so 2-TensorCore chips
    # (v7x) can split the work; negligible per-step cost on 1-TC chips.
    if pl.cdiv(b, tb) * pl.cdiv(c, tc) == 1:
        if b > 1:
            tb = pl.cdiv(b, 2)
        elif c > sub:
            tc2 = pl.cdiv(pl.cdiv(c, 2), sub) * sub
            if 0 < tc2 < c:
                tc = tc2

    grid = (pl.cdiv(b, tb), pl.cdiv(c, tc))

    out = pl.pallas_call(
        functools.partial(_localization_kernel, w=w),
        out_shape=jax.ShapeDtypeStruct((b, 2, c, hw), dtype),
        grid=grid,
        in_specs=[pl.BlockSpec((tb, tc, hw), lambda ib, ic: (ib, ic, 0))],
        out_specs=pl.BlockSpec((tb, 2, tc, hw), lambda ib, ic: (ib, 0, ic, 0)),
        compiler_params=pltpu.CompilerParams(
            dimension_semantics=("parallel", "parallel"),
            vmem_limit_bytes=vmem_limit,
        ),
    )(x)

    return out.reshape(b, 2, c, h, w)  # free reshape


def _reference(batch):
    """Pure-JAX ground truth mirroring the torch module (zero-padded stencils)."""
    b, c, h, w = batch.shape
    x = batch.astype(jnp.float32)
    p = jnp.pad(x, ((0, 0), (0, 0), (1, 1), (1, 1)))

    def sh(di, dj):
        return lax.slice(p, (0, 0, 1 + di, 1 + dj), (b, c, 1 + di + h, 1 + dj + w))

    up, dn = sh(-1, 0), sh(1, 0)
    lf, rt = sh(0, -1), sh(0, 1)
    ul, ur = sh(-1, -1), sh(-1, 1)
    dl, dr = sh(1, -1), sh(1, 1)
    di = 0.5 * (dn - up)
    dj = 0.5 * (rt - lf)
    dii = up + dn - 2.0 * x
    djj = lf + rt - 2.0 * x
    dij = 0.25 * (ul - ur - dl + dr)
    det = dii * djj - dij * dij
    inv_det = 1.0 / det
    step_i = -(djj * di - dij * dj) * inv_det
    step_j = -(dii * dj - dij * di) * inv_det
    return jnp.stack([step_i, step_j], axis=1).astype(batch.dtype), det


if __name__ == "__main__":
    key = jax.random.PRNGKey(0)
    b, c, h, w = 2, 4, 16, 16
    x = jax.random.normal(key, (b, c, h, w), dtype=jnp.float32)

    out = jax.block_until_ready(handcrafted_localization(x))
    assert out.shape == (b, 2, c, h, w), out.shape

    ref, det = _reference(x)
    ref = jax.block_until_ready(ref)
    # Compare only well-conditioned pixels (det ~ 0 gives huge / unstable steps
    # in both implementations, exactly as the torch reference does).
    good = (jnp.abs(det) > 1e-3)[:, None, :, :, :]
    rel_err = jnp.where(good, jnp.abs(out - ref) / (jnp.abs(ref) + 1e-6), 0.0)
    max_err = float(jnp.max(rel_err))
    if max_err > 1e-3:
        raise AssertionError(f"mismatch vs reference: max rel err = {max_err}")

    print("KERNEL_OK")
</pallas_src>

<mosaic_0001>
module attributes {stable_mosaic.version = 11 : i64} {
  func.func @_localization_kernel(%arg0: i32, %arg1: i32, %arg2: memref<1x4x256xf32, #tpu.memory_space<vmem>>, %arg3: memref<1x2x4x256xf32, #tpu.memory_space<vmem>>) attributes {dimension_semantics = [#tpu.dimension_semantics<parallel>, #tpu.dimension_semantics<parallel>], iteration_bounds = array<i64: 2, 1>, scalar_prefetch = 0 : i64, scratch_operands = 0 : i64, tpu.core_type = #tpu.core_type<tc>, window_params = [{transform_indices = @transform_0, window_bounds = array<i64: 1, 4, 256>}, {transform_indices = @transform_1, window_bounds = array<i64: 1, 2, 4, 256>}]} {
    %c0 = arith.constant 0 : index
    %c0_0 = arith.constant 0 : index
    %c0_1 = arith.constant 0 : index
    %0 = vector.load %arg2[%c0, %c0_0, %c0_1] : memref<1x4x256xf32, #tpu.memory_space<vmem>>, vector<1x4x256xf32>
    %1 = tpu.iota {dimensions = array<i32: 2>} : vector<1x1x256xi32>
    %c16_i32 = arith.constant 16 : i32
    %2 = vector.broadcast %c16_i32 : i32 to vector<1x1x256xi32>
    %3 = arith.cmpi slt, %1, %2 : vector<1x1x256xi32>
    %4 = vector.shape_cast %3 : vector<1x1x256xi1> to vector<1x1x256xi1>
    %5 = vector.broadcast %4 : vector<1x1x256xi1> to vector<1x4x256xi1>
    %c240_i32 = arith.constant 240 : i32
    %6 = vector.broadcast %c240_i32 : i32 to vector<1x1x256xi32>
    %7 = arith.cmpi sge, %1, %6 : vector<1x1x256xi32>
    %8 = vector.shape_cast %7 : vector<1x1x256xi1> to vector<1x1x256xi1>
    %9 = vector.broadcast %8 : vector<1x1x256xi1> to vector<1x4x256xi1>
    %c16_i32_2 = arith.constant 16 : i32
    %c0_i32 = arith.constant 0 : i32
    %10 = arith.cmpi eq, %c16_i32_2, %c0_i32 : i32
    %c1_i32 = arith.constant 1 : i32
    %11 = arith.select %10, %c1_i32, %c16_i32_2 : i32
    %12 = vector.broadcast %11 : i32 to vector<1x1x256xi32>
    %13 = arith.remsi %1, %12 : vector<1x1x256xi32>
    %c0_i32_3 = arith.constant 0 : i32
    %14 = vector.broadcast %c0_i32_3 : i32 to vector<1x1x256xi32>
    %15 = arith.cmpi ne, %13, %14 : vector<1x1x256xi32>
    %c0_i32_4 = arith.constant 0 : i32
    %16 = vector.broadcast %c0_i32_4 : i32 to vector<1x1x256xi32>
    %17 = arith.cmpi slt, %13, %16 : vector<1x1x256xi32>
    %c0_i32_5 = arith.constant 0 : i32
    %18 = arith.cmpi slt, %11, %c0_i32_5 : i32
    %19 = vector.broadcast %18 : i1 to vector<1x1x256xi1>
    %20 = vector.broadcast %19 : vector<1x1x256xi1> to vector<1x1x256xi1>
    %21 = arith.xori %17, %20 : vector<1x1x256xi1>
    %22 = arith.andi %21, %15 : vector<1x1x256xi1>
    %23 = vector.broadcast %11 : i32 to vector<1x1x256xi32>
    %24 = arith.addi %13, %23 : vector<1x1x256xi32>
    %25 = arith.select %22, %24, %13 : vector<1x1x256xi1>, vector<1x1x256xi32>
    %c0_i32_6 = arith.constant 0 : i32
    %26 = vector.broadcast %c0_i32_6 : i32 to vector<1x1x256xi32>
    %27 = arith.cmpi eq, %25, %26 : vector<1x1x256xi32>
    %28 = vector.shape_cast %27 : vector<1x1x256xi1> to vector<1x1x256xi1>
    %29 = vector.broadcast %28 : vector<1x1x256xi1> to vector<1x4x256xi1>
    %c15_i32 = arith.constant 15 : i32
    %30 = vector.broadcast %c15_i32 : i32 to vector<1x1x256xi32>
    %31 = arith.cmpi eq, %25, %30 : vector<1x1x256xi32>
    %32 = vector.shape_cast %31 : vector<1x1x256xi1> to vector<1x1x256xi1>
    %33 = vector.broadcast %32 : vector<1x1x256xi1> to vector<1x4x256xi1>
    %c16_i32_7 = arith.constant 16 : i32
    %34 = tpu.dynamic_rotate %0 by %c16_i32_7 dim 2 : vector<1x4x256xf32>, i32 -> vector<1x4x256xf32>
    %cst = arith.constant 0.000000e+00 : f32
    %35 = vector.broadcast %cst : f32 to vector<1x4x256xf32>
    %36 = arith.select %5, %35, %34 : vector<1x4x256xi1>, vector<1x4x256xf32>
    %c240_i32_8 = arith.constant 240 : i32
    %37 = tpu.dynamic_rotate %0 by %c240_i32_8 dim 2 : vector<1x4x256xf32>, i32 -> vector<1x4x256xf32>
    %cst_9 = arith.constant 0.000000e+00 : f32
    %38 = vector.broadcast %cst_9 : f32 to vector<1x4x256xf32>
    %39 = arith.select %9, %38, %37 : vector<1x4x256xi1>, vector<1x4x256xf32>
    %40 = arith.subf %39, %36 : vector<1x4x256xf32>
    %cst_10 = arith.constant 5.000000e-01 : f32
    %41 = vector.broadcast %cst_10 : f32 to vector<1x4x256xf32>
    %42 = arith.mulf %41, %40 : vector<1x4x256xf32>
    %43 = arith.addf %36, %39 : vector<1x4x256xf32>
    %cst_11 = arith.constant 2.000000e+00 : f32
    %44 = vector.broadcast %cst_11 : f32 to vector<1x4x256xf32>
    %45 = arith.mulf %44, %0 : vector<1x4x256xf32>
    %46 = arith.subf %43, %45 : vector<1x4x256xf32>
    %c1_i32_12 = arith.constant 1 : i32
    %47 = tpu.dynamic_rotate %0 by %c1_i32_12 dim 2 : vector<1x4x256xf32>, i32 -> vector<1x4x256xf32>
    %cst_13 = arith.constant 0.000000e+00 : f32
    %48 = vector.broadcast %cst_13 : f32 to vector<1x4x256xf32>
    %49 = arith.select %29, %48, %47 : vector<1x4x256xi1>, vector<1x4x256xf32>
    %c255_i32 = arith.constant 255 : i32
    %50 = tpu.dynamic_rotate %0 by %c255_i32 dim 2 : vector<1x4x256xf32>, i32 -> vector<1x4x256xf32>
    %cst_14 = arith.constant 0.000000e+00 : f32
    %51 = vector.broadcast %cst_14 : f32 to vector<1x4x256xf32>
    %52 = arith.select %33, %51, %50 : vector<1x4x256xi1>, vector<1x4x256xf32>
    %53 = arith.subf %52, %49 : vector<1x4x256xf32>
    %cst_15 = arith.constant 5.000000e-01 : f32
    %54 = vector.broadcast %cst_15 : f32 to vector<1x4x256xf32>
    %55 = arith.mulf %54, %53 : vector<1x4x256xf32>
    %56 = arith.addf %49, %52 : vector<1x4x256xf32>
    %cst_16 = arith.constant 2.000000e+00 : f32
    %57 = vector.broadcast %cst_16 : f32 to vector<1x4x256xf32>
    %58 = arith.mulf %57, %0 : vector<1x4x256xf32>
    %59 = arith.subf %56, %58 : vector<1x4x256xf32>
    %c240_i32_17 = arith.constant 240 : i32
    %60 = tpu.dynamic_rotate %55 by %c240_i32_17 dim 2 : vector<1x4x256xf32>, i32 -> vector<1x4x256xf32>
    %cst_18 = arith.constant 0.000000e+00 : f32
    %61 = vector.broadcast %cst_18 : f32 to vector<1x4x256xf32>
    %62 = arith.select %9, %61, %60 : vector<1x4x256xi1>, vector<1x4x256xf32>
    %c16_i32_19 = arith.constant 16 : i32
    %63 = tpu.dynamic_rotate %55 by %c16_i32_19 dim 2 : vector<1x4x256xf32>, i32 -> vector<1x4x256xf32>
    %cst_20 = arith.constant 0.000000e+00 : f32
    %64 = vector.broadcast %cst_20 : f32 to vector<1x4x256xf32>
    %65 = arith.select %5, %64, %63 : vector<1x4x256xi1>, vector<1x4x256xf32>
    %66 = arith.subf %62, %65 : vector<1x4x256xf32>
    %cst_21 = arith.constant 5.000000e-01 : f32
    %67 = vector.broadcast %cst_21 : f32 to vector<1x4x256xf32>
    %68 = arith.mulf %67, %66 : vector<1x4x256xf32>
    %69 = arith.mulf %46, %59 : vector<1x4x256xf32>
    %70 = arith.mulf %68, %68 : vector<1x4x256xf32>
    %71 = arith.subf %69, %70 : vector<1x4x256xf32>
    %cst_22 = arith.constant 1.000000e+00 : f32
    %72 = vector.broadcast %cst_22 : f32 to vector<1x4x256xf32>
    %73 = arith.divf %72, %71 : vector<1x4x256xf32>
    %74 = arith.mulf %59, %42 : vector<1x4x256xf32>
    %75 = arith.mulf %68, %55 : vector<1x4x256xf32>
    %76 = arith.subf %74, %75 : vector<1x4x256xf32>
    %cst_23 = arith.constant 0.000000e+00 : f32
    %77 = vector.broadcast %cst_23 : f32 to vector<1x4x256xf32>
    %78 = arith.subf %77, %76 : vector<1x4x256xf32>
    %79 = arith.mulf %78, %73 : vector<1x4x256xf32>
    %c0_24 = arith.constant 0 : index
    %c0_25 = arith.constant 0 : index
    %c0_26 = arith.constant 0 : index
    %c0_27 = arith.constant 0 : index
    %80 = vector.load %arg3[%c0_24, %c0_25, %c0_26, %c0_27] : memref<1x2x4x256xf32, #tpu.memory_space<vmem>>, vector<1x1x4x256xf32>
    %81 = vector.shape_cast %80 : vector<1x1x4x256xf32> to vector<1x4x256xf32>
    %82 = vector.shape_cast %79 : vector<1x4x256xf32> to vector<1x1x4x256xf32>
    tpu.vector_store %arg3[%c0_24, %c0_25, %c0_26, %c0_27], %82 {strides = array<i32>} : memref<1x2x4x256xf32, #tpu.memory_space<vmem>>, vector<1x1x4x256xf32>,
    %83 = arith.mulf %46, %55 : vector<1x4x256xf32>
    %84 = arith.mulf %68, %42 : vector<1x4x256xf32>
    %85 = arith.subf %83, %84 : vector<1x4x256xf32>
    %cst_28 = arith.constant 0.000000e+00 : f32
    %86 = vector.broadcast %cst_28 : f32 to vector<1x4x256xf32>
    %87 = arith.subf %86, %85 : vector<1x4x256xf32>
    %88 = arith.mulf %87, %73 : vector<1x4x256xf32>
    %c0_29 = arith.constant 0 : index
    %c1 = arith.constant 1 : index
    %c0_30 = arith.constant 0 : index
    %c0_31 = arith.constant 0 : index
    %89 = vector.load %arg3[%c0_29, %c1, %c0_30, %c0_31] : memref<1x2x4x256xf32, #tpu.memory_space<vmem>>, vector<1x1x4x256xf32>
    %90 = vector.shape_cast %89 : vector<1x1x4x256xf32> to vector<1x4x256xf32>
    %91 = vector.shape_cast %88 : vector<1x4x256xf32> to vector<1x1x4x256xf32>
    tpu.vector_store %arg3[%c0_29, %c1, %c0_30, %c0_31], %91 {strides = array<i32>} : memref<1x2x4x256xf32, #tpu.memory_space<vmem>>, vector<1x1x4x256xf32>,
    return
  }
  func.func @transform_0(%arg0: i32, %arg1: i32) -> (i32, i32, i32) {
    %c0_i32 = arith.constant 0 : i32
    %c0_i32_0 = arith.constant 0 : i32
    return %arg0, %arg1, %c0_i32 : i32, i32, i32
  }
  func.func @transform_1(%arg0: i32, %arg1: i32) -> (i32, i32, i32, i32) {
    %c0_i32 = arith.constant 0 : i32
    %c0_i32_0 = arith.constant 0 : i32
    %c0_i32_1 = arith.constant 0 : i32
    return %arg0, %c0_i32, %arg1, %c0_i32_0 : i32, i32, i32, i32
  }
}

</mosaic_0001>

<llo_original>
// kernel: tpu_custom_call.1
$region0: #{tpu_custom_call.1}
  #allocation0 [shape = 'u32[]', space=smem, size = 0x4, offset = 0x4, fixed_abs, tag = 'smem constant byte address 0x4 - core index']
  #allocation1 [shape = 'u32[144,128]{1,0:T(1,128)}', space=vmem, size = 0x12000, scoped, tag = 'internal scratch']
  %s0 = inlined_call_operand.hbm [shape: f32[2,4,256], index: 0, kind: input, shape index: {}]
  %s1 = inlined_call_operand.hbm [shape: f32[2,2,4,256], index: 1, kind: output, shape index: {}]
  %s2 = sld [smem:[#allocation0]]
  $region41: #{tpu_custom_call.1} parent=0
    _
  %s4 = ssub.s32 1, %s2
  %s5 = scalar_select 0, %s4, %s2
  $region1: #{tpu_custom_call.1} parent=0
    #allocation2 [shape = 'u8[8192]{0}', space=vmem, size = 0x2000, scoped, tag = 'input window, operand 0']
    #allocation3 [shape = 's32[2]{0}', space=sflag, size = 0x8, scoped, tag = 'scoped memory for tpu_custom_call.1']
    #allocation4 [shape = 's32[2]{0}', space=sflag, size = 0x8, scoped, tag = 'scoped memory for tpu_custom_call.1']
    #allocation5 [shape = 'u8[16384]{0}', space=vmem, size = 0x4000, scoped, tag = 'output window, operand 0']
    %6 = vsyncpa [#allocation3], 0
    %s7 = scalar_lea.sflag [#allocation3], 1
    %8 = vsyncpa %s7, 0
    %9 = vsyncpa [#allocation4], 0
    %s10 = scalar_lea.sflag [#allocation4], 1
    %11 = vsyncpa %s10, 0
    loop: start=0, step=1, limit=4
    $region2: #{tpu_custom_call.1} parent=1 // loop_pre_header
      _
    $region3: #{tpu_custom_call.1} parent=1 // loop_header
      %s13 = sphi 0, %s17
      %p14 = scmp.ge.s32.totalorder %s13, 4
      %s20 = sphi 0, %s32
      %s21 = sphi 0, %s28
      %s22 = sphi 0, %s20
      %s23 = sphi 0, %s21
      %s24 = sphi 0, %s22
      %s25 = sphi 0, %s23
      %s37 = sphi 0, %s39
      %s40 = sphi 0, %s37
      %s41 = sphi 0, %s40
      %s57 = sphi 0, %s41
      %s65 = sphi 0, %s67
      %s68 = sphi 0, %s65
      %s69 = sphi 0, %s68
      %s85 = sphi 0, %s69
    $region4: #{tpu_custom_call.1} parent=1 // loop_header_branch
      %16 = sbr.rel (%p14) target = $region8
    $region5: #{tpu_custom_call.1} parent=1 // loop_body
      %s18 = ssub.s32 %s13, 1
      %s19 = ssub.s32 %s13, 2
      %s26 = sadd.s32 1, %s21
      %p27 = scmp.ge.s32.totalorder %s26, 1
      %s28 = scalar_select %p27, 0, %s26
      %s29 = sadd.s32 1, %s20
      %s30 = scalar_select %p27, %s29, %s20
      %p31 = scmp.ge.s32.totalorder %s30, 2
      %s32 = scalar_select %p31, 0, %s30
      %s33 = ssub.s32 %s20, %s32
      %s34 = ssub.s32 %s21, %s28
      %s35 = sor.u32 %s33, %s34
      %p36 = scmp.eq.s32.totalorder %s35, 0
      %s38 = sadd.s32 %s37, 1
      %s39 = scalar_select %p36, %s37, %s38
      %p42 = pneg %p36
      %p43 = scmp.eq.s32.totalorder %s13, 1
      %p44 = por %p42, %p43
      %p45 = scmp.ne.s32.totalorder %s37, %s40
      %p46 = scmp.eq.s32.totalorder %s13, 0
      %p47 = por %p45, %p46
      %p48 = scmp.ne.s32.totalorder %s37, %s40
      %p49 = scmp.eq.s32.totalorder %s18, 1
      %p50 = por %p48, %p49
      %p51 = scmp.ne.s32.totalorder %s40, %s41
      %p52 = scmp.eq.s32.totalorder %s18, 0
      %p53 = por %p51, %p52
      %p54 = scmp.ne.s32.totalorder %s40, %s41
      %p55 = scmp.eq.s32.totalorder %s19, 1
      %p56 = por %p54, %p55
      %p58 = scmp.ne.s32.totalorder %s41, %s57
      %p59 = scmp.eq.s32.totalorder %s19, 0
      %p60 = por %p58, %p59
      %s61 = ssub.s32 %s20, %s32
      %s62 = ssub.s32 %s21, %s28
      %s63 = sor.u32 %s61, %s62
      %p64 = scmp.eq.s32.totalorder %s63, 0
      %s66 = sadd.s32 %s65, 1
      %s67 = scalar_select %p64, %s65, %s66
      %p70 = pneg %p64
      %p71 = scmp.eq.s32.totalorder %s13, 1
      %p72 = por %p70, %p71
      %p73 = scmp.ne.s32.totalorder %s65, %s68
      %p74 = scmp.eq.s32.totalorder %s13, 0
      %p75 = por %p73, %p74
      %p76 = scmp.ne.s32.totalorder %s65, %s68
      %p77 = scmp.eq.s32.totalorder %s18, 1
      %p78 = por %p76, %p77
      %p79 = scmp.ne.s32.totalorder %s68, %s69
      %p80 = scmp.eq.s32.totalorder %s18, 0
      %p81 = por %p79, %p80
      %p82 = scmp.ne.s32.totalorder %s68, %s69
      %p83 = scmp.eq.s32.totalorder %s19, 1
      %p84 = por %p82, %p83
      %p86 = scmp.ne.s32.totalorder %s69, %s85
      %p87 = scmp.eq.s32.totalorder %s19, 0
      %p88 = por %p86, %p87
      %p89 = scmp.le.s32.totalorder 1, %s13
      %p90 = scmp.lt.s32.totalorder %s13, 3
      %p91 = pnand %p89, %p90
      %p92 = pneg %p91
      // Predicated region
      $region9: #{tpu_custom_call.1} parent=5 // pred_check
        _
      $region10: #{tpu_custom_call.1} parent=5 // pred_check_branch
        %94 = sbr.rel (%p91) target = $region12
      $region11: #{tpu_custom_call.1} parent=5 // pred_region
        %s95 = ssub.s32 %s13, 1
      $region12: #{tpu_custom_call.1} parent=5 // pred_fallthru
        _
      %p96 = scmp.lt.s32.totalorder %s13, 2
      // Predicated region
      $region13: #{tpu_custom_call.1} parent=5 // pred_check
        %p97 = pneg %p96
      $region14: #{tpu_custom_call.1} parent=5 // pred_check_branch
        %99 = sbr.rel (%p97) target = $region16
      $region15: #{tpu_custom_call.1} parent=5 // pred_region
        // Predicated region
        $region17: #{tpu_custom_call.1} parent=15 // pred_check
          %p100 = pneg %p47
        $region18: #{tpu_custom_call.1} parent=15 // pred_check_branch
          %102 = sbr.rel (%p100) target = $region20
        $region19: #{tpu_custom_call.1} parent=15 // pred_region
          %s103 = sand.u32 %s37, 1
          %s104 = scalar_lea.sflag [#allocation3], %s103
          %s105 = sand.u32 %s37, 1
          %s106 = smul.addr %s105, 8
          %s107 = scalar_lea.vmem [#allocation2], %s106
          %s109 = ssub.s32 128, 128
          %110 = vsyncadd %s104, %s109
          %s111 = smul.addr %s21, 2
          %s112 = smul.addr %s20, 2
          %s113 = sadd.s32 %s111, %s112
          %s114 = smul.addr %s113, 64
          %s115 = scalar_lea.hbm %s0, %s114
          %s117 = sshll.u32 %s107, 4
          %s118 = int_to_ptr.vmem [resolvable:$true] %s117
          %120 = dma.hbm_to_vmem [thread:$0]  %s115, 128, %s118, %s104
        $region20: #{tpu_custom_call.1} parent=15 // pred_fallthru
          _
      $region16: #{tpu_custom_call.1} parent=5 // pred_fallthru
        _
      %p121 = scmp.le.s32.totalorder 1, %s13
      %p122 = scmp.lt.s32.totalorder %s13, 3
      %p123 = pnand %p121, %p122
      %p124 = pneg %p123
      // Predicated region
      $region21: #{tpu_custom_call.1} parent=5 // pred_check
        _
      $region22: #{tpu_custom_call.1} parent=5 // pred_check_branch
        %126 = sbr.rel (%p123) target = $region24
      $region23: #{tpu_custom_call.1} parent=5 // pred_region
        %s127 = ssub.s32 %s13, 1
        %s128 = sand.u32 %s40, 1
        %s129 = scalar_lea.sflag [#allocation3], %s128
        %s130 = sand.u32 %s40, 1
        %s131 = smul.addr %s130, 8
        %s132 = scalar_lea.vmem [#allocation2], %s131
        // Predicated region
        $region25: #{tpu_custom_call.1} parent=23 // pred_check
          %p133 = pneg %p53
        $region26: #{tpu_custom_call.1} parent=23 // pred_check_branch
          %135 = sbr.rel (%p133) target = $region28
        $region27: #{tpu_custom_call.1} parent=23 // pred_region
          %136 = dma.done %s129, 128
        $region28: #{tpu_custom_call.1} parent=23 // pred_fallthru
          _
        %s137 = sand.u32 %s40, 1
        %s138 = scalar_lea.sflag [#allocation3], %s137
        %s139 = sand.u32 %s40, 1
        %s140 = smul.addr %s139, 8
        %s141 = scalar_lea.vmem [#allocation2], %s140
        %p142 = pneg %p53
        %p143 = pneg %p50
        %p144 = pneg %p81
        %p145 = pneg %p78
        %s146 = sand.u32 %s68, 1
        %s147 = scalar_lea.sflag [#allocation4], %s146
        %s148 = sand.u32 %s68, 1
        %s149 = smul.addr %s148, 16
        %s150 = scalar_lea.vmem [#allocation5], %s149
        %v151 = vld [vmem:[%s132] sm:$0xff]
        %v152 = vlaneseq
        %v153 = vand.u32 %v152, 127
        %v154 = vadd.s32 %v153, 128
        %vm155 = vcmp.lt.s32.totalorder %v153, 16
        %vm156 = vcmp.lt.s32.totalorder %v154, 16
        %v157 = vsel %vm155, 1, 0
        %v158 = vsel %vm156, 1, 0
        %vm159 = vcmp.eq.s32.totalorder %v157, 1
        %vm160 = vcmp.eq.s32.totalorder %v158, 1
        %vm161 = vcmp.ge.s32.totalorder %v153, 240
        %vm162 = vcmp.ge.s32.totalorder %v154, 240
        %v163 = vsel %vm161, 1, 0
        %v164 = vsel %vm162, 1, 0
        %vm165 = vcmp.eq.s32.totalorder %v163, 1
        %vm166 = vcmp.eq.s32.totalorder %v164, 1
        %vm167 = vcmp.lt.s32.totalorder %v153, 0
        %v168 = vsub.s32 0, %v153
        %v169 = vsel %vm167, %v168, %v153
        %v170 = vshrl.u32 %v169, 4
        %v171 = vand.u32 %v169, 15
        %v172 = vsub.s32 0, %v171
        %v173 = vsel %vm167, %v172, %v171
        %vm174 = vcmp.lt.s32.totalorder %v154, 0
        %v175 = vsub.s32 0, %v154
        %v176 = vsel %vm174, %v175, %v154
        %v177 = vshrl.u32 %v176, 4
        %v178 = vand.u32 %v176, 15
        %v179 = vsub.s32 0, %v178
        %v180 = vsel %vm174, %v179, %v178
        %vm181 = vcmp.ne.s32.totalorder %v173, 0
        %vm182 = vcmp.ne.s32.totalorder %v180, 0
        %vm183 = vcmp.lt.s32.totalorder %v173, 0
        %vm184 = vcmp.lt.s32.totalorder %v180, 0
        %vm185 = vmand %vm183, %vm181
        %vm186 = vmand %vm184, %vm182
        %v187 = vadd.s32 %v173, 16
        %v188 = vadd.s32 %v180, 16
        %v189 = vsel %vm185, %v187, %v173
        %v190 = vsel %vm186, %v188, %v180
        %vm191 = vcmp.eq.s32.totalorder %v189, 0
        %vm192 = vcmp.eq.s32.totalorder %v190, 0
        %v193 = vsel %vm191, 1, 0
        %v194 = vsel %vm192, 1, 0
        %vm195 = vcmp.eq.s32.totalorder %v193, 1
        %vm196 = vcmp.eq.s32.totalorder %v194, 1
        %vm197 = vcmp.eq.s32.totalorder %v189, 15
        %vm198 = vcmp.eq.s32.totalorder %v190, 15
        %v199 = vsel %vm197, 1, 0
        %v200 = vsel %vm198, 1, 0
        %vm201 = vcmp.eq.s32.totalorder %v199, 1
        %vm202 = vcmp.eq.s32.totalorder %v200, 1
        %v204 = vcombine.high %v151, %v151
        %206 = vrot.lane.b32.xlu0 %v151, 16
        %v207 = vpop.permute.xlu0 %206
        %208 = vrot.lane.b32.xlu0 %v204, 16
        %v209 = vpop.permute.xlu0 %208
        %v210 = vsel %vm155, %v207, %v209
        %v211 = vsel %vm155, %v209, %v207
        %v212 = vsel %vm159, 0.0, %v211
        %v213 = vsel %vm160, 0.0, %v210
        %214 = vrot.lane.b32.xlu0 %v151, 112
        %v215 = vpop.permute.xlu0 %214
        %216 = vrot.lane.b32.xlu0 %v204, 112
        %v217 = vpop.permute.xlu0 %216
        %vm218 = vcmp.lt.s32.totalorder %v153, 112
        %v219 = vsel %vm218, %v215, %v217
        %v220 = vsel %vm218, %v217, %v215
        %v221 = vsel %vm165, 0.0, %v219
        %v222 = vsel %vm166, 0.0, %v220
        %v223 = vsub.f32 %v221, %v212
        %v224 = vsub.f32 %v222, %v213
        %v225 = vmul.f32 %v223, 0.5
        %v226 = vmul.f32 %v224, 0.5
        %v227 = vadd.f32 %v212, %v221
        %v228 = vadd.f32 %v213, %v222
        %v229 = vmul.f32 %v151, 2.0
        %v231 = vcombine.high %v229, %v229
        %v233 = vsub.f32 %v227, %v229
        %v234 = vsub.f32 %v228, %v231
        %235 = vrot.lane.b32.xlu0 %v151, 1
        %v236 = vpop.permute.xlu0 %235
        %237 = vrot.lane.b32.xlu0 %v204, 1
        %v238 = vpop.permute.xlu0 %237
        %vm239 = vcmp.lt.s32.totalorder %v153, 1
        %v240 = vsel %vm239, %v236, %v238
        %v241 = vsel %vm239, %v238, %v236
        %v242 = vsel %vm195, 0.0, %v241
        %v243 = vsel %vm196, 0.0, %v240
        %244 = vrot.lane.b32.xlu0 %v151, 127
        %v245 = vpop.permute.xlu0 %244
        %246 = vrot.lane.b32.xlu0 %v204, 127
        %v247 = vpop.permute.xlu0 %246
        %vm248 = vcmp.lt.s32.totalorder %v153, 127
        %v249 = vsel %vm248, %v245, %v247
        %v250 = vsel %vm248, %v247, %v245
        %v251 = vsel %vm201, 0.0, %v249
        %v252 = vsel %vm202, 0.0, %v250
        %v253 = vsub.f32 %v251, %v242
        %v254 = vsub.f32 %v252, %v243
        %v255 = vmul.f32 %v253, 0.5
        %v256 = vmul.f32 %v254, 0.5
        %v257 = vadd.f32 %v242, %v251
        %v258 = vadd.f32 %v243, %v252
        %v259 = vsub.f32 %v257, %v229
        %v260 = vsub.f32 %v258, %v231
        %261 = vrot.lane.b32.xlu0 %v255, 112
        %v262 = vpop.permute.xlu0 %261
        %263 = vrot.lane.b32.xlu0 %v256, 112
        %v264 = vpop.permute.xlu0 %263
        %v265 = vsel %vm218, %v262, %v264
        %v266 = vsel %vm218, %v264, %v262
        %v267 = vsel %vm165, 0.0, %v265
        %v268 = vsel %vm166, 0.0, %v266
        %269 = vrot.lane.b32.xlu0 %v255, 16
        %v270 = vpop.permute.xlu0 %269
        %271 = vrot.lane.b32.xlu0 %v256, 16
        %v272 = vpop.permute.xlu0 %271
        %v273 = vsel %vm155, %v270, %v272
        %v274 = vsel %vm155, %v272, %v270
        %v275 = vsel %vm159, 0.0, %v274
        %v276 = vsel %vm160, 0.0, %v273
        %v277 = vsub.f32 %v267, %v275
        %v278 = vsub.f32 %v268, %v276
        %v279 = vmul.f32 %v277, 0.5
        %v280 = vmul.f32 %v278, 0.5
        %v281 = vmul.f32 %v233, %v259
        %v282 = vmul.f32 %v234, %v260
        %v283 = vmul.f32 %v279, %v279
        %v284 = vmul.f32 %v280, %v280
        %v285 = vsub.f32 %v281, %v283
        %v286 = vsub.f32 %v282, %v284
        %v287 = vrcp.pop %v285
        %v288 = vmul.f32 1.0, %v287
        %v289 = vrcp.pop %v286
        %v290 = vmul.f32 1.0, %v289
        %v291 = vmul.f32 %v259, %v225
        %v292 = vmul.f32 %v260, %v226
        %v293 = vmul.f32 %v279, %v255
        %v294 = vmul.f32 %v280, %v256
        %v295 = vsub.f32 %v291, %v293
        %v296 = vsub.f32 %v292, %v294
        %v297 = vsub.f32 0.0, %v295
        %v298 = vsub.f32 0.0, %v296
        %v299 = vmul.f32 %v297, %v288
        %v300 = vmul.f32 %v298, %v290
        %v303 = vcombine.low %v299, %v300
        %305 = vst [vmem:[%s150] sm:$0xff] %v303
        %v306 = vmul.f32 %v233, %v255
        %v307 = vmul.f32 %v234, %v256
        %v308 = vmul.f32 %v279, %v225
        %v309 = vmul.f32 %v280, %v226
        %v310 = vsub.f32 %v306, %v308
        %v311 = vsub.f32 %v307, %v309
        %v312 = vsub.f32 0.0, %v310
        %v313 = vsub.f32 0.0, %v311
        %v314 = vmul.f32 %v312, %v288
        %v315 = vmul.f32 %v313, %v290
        %v318 = vcombine.low %v314, %v315
        %s320 = scalar_lea.vmem %s150, 8 [#allocation5]
        %321 = vst [vmem:[%s320] sm:$0xff] %v318
        %s322 = sand.u32 %s68, 1
        %s323 = scalar_lea.sflag [#allocation4], %s322
        %s324 = sand.u32 %s68, 1
        %s325 = smul.addr %s324, 16
        %s326 = scalar_lea.vmem [#allocation5], %s325
        // Predicated region
        $region29: #{tpu_custom_call.1} parent=23 // pred_check
          %p327 = pneg %p78
        $region30: #{tpu_custom_call.1} parent=23 // pred_check_branch
          %329 = sbr.rel (%p327) target = $region32
        $region31: #{tpu_custom_call.1} parent=23 // pred_region
          %s331 = ssub.s32 256, 256
          %332 = vsyncadd %s323, %s331
          %s333 = smul.addr %s23, 2
          %s334 = smul.addr %s22, 4
          %s335 = sadd.s32 %s333, %s334
          %s336 = smul.addr %s335, 64
          %s337 = scalar_lea.hbm %s1, %s336
          %s338 = sshll.u32 %s326, 4
          %s339 = int_to_ptr.vmem [resolvable:$true] %s338
          %344 = dma.vmem_to_hbm [thread:$0]  %s339, 256, %s337, %s323, 128, 128, 8
        $region32: #{tpu_custom_call.1} parent=23 // pred_fallthru
          _
      $region24: #{tpu_custom_call.1} parent=5 // pred_fallthru
        _
      %p345 = scmp.le.s32.totalorder 2, %s13
      // Predicated region
      $region33: #{tpu_custom_call.1} parent=5 // pred_check
        %p346 = pneg %p345
      $region34: #{tpu_custom_call.1} parent=5 // pred_check_branch
        %348 = sbr.rel (%p346) target = $region36
      $region35: #{tpu_custom_call.1} parent=5 // pred_region
        %s349 = ssub.s32 %s13, 2
        // Predicated region
        $region37: #{tpu_custom_call.1} parent=35 // pred_check
          %p350 = pneg %p84
        $region38: #{tpu_custom_call.1} parent=35 // pred_check_branch
          %352 = sbr.rel (%p350) target = $region40
        $region39: #{tpu_custom_call.1} parent=35 // pred_region
          %s353 = sand.u32 %s69, 1
          %s354 = scalar_lea.sflag [#allocation4], %s353
          %s355 = sand.u32 %s69, 1
          %s356 = smul.addr %s355, 16
          %s357 = scalar_lea.vmem [#allocation5], %s356
          %358 = dma.done %s354, 256
        $region40: #{tpu_custom_call.1} parent=35 // pred_fallthru
          _
      $region36: #{tpu_custom_call.1} parent=5 // pred_fallthru
        _
    $region6: #{tpu_custom_call.1} parent=1 // loop_footer
      %s17 = sadd.s32 1, %s13
    $region7: #{tpu_custom_call.1} parent=1 // loop_footer_branch
      %12 = sbr.rel target = $region3
    $region8: #{tpu_custom_call.1} parent=1 // loop_exit
      _
    %359 = vsyncpa [#allocation3], 1
    %s360 = scalar_lea.sflag [#allocation3], 1
    %361 = vsyncpa %s360, 1
    %362 = vsyncpa [#allocation4], 1
    %s363 = scalar_lea.sflag [#allocation4], 1
    %364 = vsyncpa %s363, 1

</llo_original>
